<compile_context>
chip_gen: v6e
topology: v6e:2x2x1
jax: 0.10.0
libtpu: 0.0.40
codegen_flags: <defaults>
</compile_context>

<pallas_src>
import math
import functools

import jax
import jax.numpy as jnp
from jax.experimental import pallas as pl
from jax.experimental.pallas import tpu as pltpu


_INV_SQRT2 = 1.0 / math.sqrt(2.0)


def _gelu_exact(h):
    # Exact (erf-based) GELU in f32, matching PyTorch's default nn.GELU().
    return 0.5 * h * (1.0 + jax.lax.erf(h * _INV_SQRT2))


# --------------------------------------------------------------------------- kernels


def _ffn_resident_kernel(x_ref, w1_ref, b1_ref, w2_ref, b2_ref, o_ref, *, mm_dtype):
    """Whole FFN for one row tile; W1/W2 stay VMEM-resident across the grid."""
    x = x_ref[...].astype(mm_dtype)
    h = jnp.dot(x, w1_ref[...], preferred_element_type=jnp.float32)
    h = h + b1_ref[...].astype(jnp.float32)
    g = _gelu_exact(h)
    # Dropout(p) in eval mode == identity.
    out = jnp.dot(g.astype(mm_dtype), w2_ref[...], preferred_element_type=jnp.float32)
    o_ref[...] = (out + b2_ref[...].astype(jnp.float32)).astype(o_ref.dtype)


def _ffn_streamed_kernel(x_ref, w1_ref, b1_ref, w2_ref, b2_ref, o_ref, acc_ref,
                         *, mm_dtype):
    """One (row-tile, hidden-tile) step of  GELU(x @ W1 + b1) @ W2 + b2."""
    h_idx = pl.program_id(1)

    @pl.when(h_idx == 0)
    def _():
        acc_ref[...] = jnp.zeros_like(acc_ref)

    # (TR, Wp) @ (Wp, TH) -> (TR, TH), f32 accumulation on the MXU.
    x = x_ref[...].astype(mm_dtype)
    h = jnp.dot(x, w1_ref[...], preferred_element_type=jnp.float32)
    h = h + b1_ref[...].astype(jnp.float32)
    g = _gelu_exact(h)

    # Dropout(p) in eval mode == identity.
    # Second linear contribution, accumulated across hidden tiles:
    # (TR, TH) @ (TH, Wp) -> (TR, Wp)
    acc_ref[...] += jnp.dot(g.astype(mm_dtype), w2_ref[...],
                            preferred_element_type=jnp.float32)

    @pl.when(h_idx == pl.num_programs(1) - 1)
    def _():
        o_ref[...] = (acc_ref[...] + b2_ref[...].astype(jnp.float32)).astype(o_ref.dtype)


# --------------------------------------------------------------------------- planning


def _round_up(x, m):
    return ((x + m - 1) // m) * m


def _round_down(x, m):
    return (x // m) * m


def _vmem_capacity_bytes():
    """Physical per-core VMEM; conservative fallback = v7x's 64 MiB."""
    try:
        info = pltpu.get_tpu_info()
        for name in ("vmem_capacity_bytes", "vmem_bytes", "vmem_capacity"):
            cap = getattr(info, name, None)
            if cap:
                return int(cap)
    except Exception:
        pass
    return 64 << 20


def _plan_tiles(rows, width_p, hidden_p, x_isz, w_isz, out_isz, sublane, usable):
    """Pick (mode, tile_r, tile_h) that fits the per-generation VMEM budget.

    mode == "resident": weights fully VMEM-resident, grid = (row_tiles,).
    mode == "streamed": weights streamed along the hidden dim, grid = (rows, hidden).
    Estimates assume the default double buffering on every BlockSpec input/output.
    """
    rows_r = _round_up(max(rows, 1), sublane)

    # ---- Path A: full weight residency (constant index_map => weights fetched once).
    w_fixed = (2 * 2 * width_p * hidden_p * w_isz          # W1 + W2, double-buffered
               + 2 * (hidden_p + width_p) * 4)             # f32 biases
    per_row = (2 * width_p * (x_isz + out_isz)             # x + out tiles (2 buffers)
               + hidden_p * (4 + w_isz))                   # f32 hidden slab + cast copy
    if w_fixed < usable:
        tr = (usable - w_fixed) // per_row
        tr = _round_down(min(tr, 1024, rows_r), sublane)
        if tr >= min(rows_r, 256):
            return "resident", max(tr, sublane), hidden_p

    # ---- Path B: stream W1/W2 along the hidden (4*width) dim with an f32 accumulator.
    row_pref = 1024 if w_isz <= 2 else 512                 # weight-stream AI lever
    for tr in (c for c in (1024, 768, 512, 384, 256, 192, 128, 64, 32, 16, 8)
               if c <= row_pref):
        tr = _round_up(min(tr, rows_r), sublane)
        fixed = (2 * tr * width_p * (x_isz + out_isz)      # x + out tiles
                 + tr * width_p * 4                        # f32 accumulator scratch
                 + 2 * width_p * 4)                        # b2
        if fixed >= usable:
            continue
        per_h = (2 * 2 * width_p * w_isz                   # W1 column tile + W2 row tile
                 + 2 * 4                                   # b1
                 + tr * (4 + w_isz))                       # f32 intermediate + cast copy
        th = _round_down(min((usable - fixed) // per_h, hidden_p, 2048), 128)
        if th >= min(hidden_p, 512):                       # acc-RMW / per-step lever
            return "streamed", tr, th
        if th >= 128 and tr <= 256:
            return "streamed", tr, th

    # Last resort (huge width on a tiny VMEM budget): minimal legal tiles.
    return "streamed", _round_up(min(rows_r, 2 * sublane), sublane), 128


# --------------------------------------------------------------------------- wrapper


@functools.partial(jax.jit, static_argnames=("prefer_bf16",))
def feed_forward(x, w1, b1, w2, b2, *, prefer_bf16=True):
    """x: (..., width) -> (..., width), equivalent to FeedForward.forward in eval mode."""
    orig_shape = x.shape
    width = orig_shape[-1]
    hidden = w1.shape[1]
    assert w1.shape == (width, hidden)
    assert b1.shape == (hidden,)
    assert w2.shape == (hidden, width)
    assert b2.shape == (width,)

    x2d = x.reshape(-1, width)
    rows = x2d.shape[0]
    out_dtype = x.dtype

    # Matmul operand dtype: the MXU is bf16-native on v5e/v6e/v7x.
    if prefer_bf16 and x.dtype in (jnp.float32, jnp.bfloat16):
        mm_dtype = jnp.bfloat16
    elif x.dtype == jnp.bfloat16 or w1.dtype == jnp.bfloat16:
        mm_dtype = jnp.bfloat16
    else:
        mm_dtype = jnp.float32

    x_isz = jnp.dtype(x.dtype).itemsize
    out_isz = jnp.dtype(out_dtype).itemsize
    w_isz = jnp.dtype(mm_dtype).itemsize

    # Lane-dense last dims: pad width & hidden to multiples of 128. Zero padding is
    # inert through Linear -> GELU -> Linear; padded output columns are sliced off.
    width_p = _round_up(width, 128)
    hidden_p = _round_up(hidden, 128)

    # bf16 packs two rows per sublane -> row tile multiple of 16 (8 for f32).
    sublane = 8 * max(1, 4 // x_isz)

    capacity = _vmem_capacity_bytes()
    vmem_limit = int(capacity * 0.85)          # never exceeds physical VMEM (v7x-safe)
    usable = int(capacity * 0.8 * 0.85)        # planning budget with compiler headroom

    mode, tile_r, tile_h = _plan_tiles(rows, width_p, hidden_p,
                                       x_isz, w_isz, out_isz, sublane, usable)

    padded_rows = _round_up(max(rows, 1), tile_r)
    hidden_pp = _round_up(hidden_p, tile_h)    # pad (don't divisor-search) the hidden dim

    # Pad operands (all zero pads => mathematically inert). Weights are cast to the
    # matmul dtype wrapper-side, which also halves their HBM streaming when bf16.
    x2d = jnp.pad(x2d, ((0, padded_rows - rows), (0, width_p - width)))
    w1p = jnp.pad(w1, ((0, width_p - width), (0, hidden_pp - hidden))).astype(mm_dtype)
    w2p = jnp.pad(w2, ((0, hidden_pp - hidden), (0, width_p - width))).astype(mm_dtype)
    b1p = jnp.pad(b1.astype(jnp.float32), ((0, hidden_pp - hidden),)).reshape(1, hidden_pp)
    b2p = jnp.pad(b2.astype(jnp.float32), ((0, width_p - width),)).reshape(1, width_p)

    flops = 4 * padded_rows * width_p * hidden_pp          # two matmuls, 2 flops/MAC
    transcendentals = padded_rows * hidden_pp              # one erf per hidden element

    if mode == "resident":
        grid = (padded_rows // tile_r,)
        in_specs = [
            pl.BlockSpec((tile_r, width_p), lambda i: (i, 0)),      # x row tile
            pl.BlockSpec((width_p, hidden_pp), lambda i: (0, 0)),   # W1 (resident)
            pl.BlockSpec((1, hidden_pp), lambda i: (0, 0)),         # b1 (resident)
            pl.BlockSpec((hidden_pp, width_p), lambda i: (0, 0)),   # W2 (resident)
            pl.BlockSpec((1, width_p), lambda i: (0, 0)),           # b2 (resident)
        ]
        out_specs = pl.BlockSpec((tile_r, width_p), lambda i: (i, 0))
        scratch_shapes = ()
        kernel = functools.partial(_ffn_resident_kernel, mm_dtype=mm_dtype)
        dim_sem = ("parallel",)
        # Weights fetched exactly once (constant block index across the grid).
        bytes_accessed = (x_isz * padded_rows * width_p
                          + out_isz * padded_rows * width_p
                          + w_isz * 2 * width_p * hidden_pp
                          + 4 * (hidden_pp + width_p))
    else:
        grid = (padded_rows // tile_r, hidden_pp // tile_h)
        in_specs = [
            pl.BlockSpec((tile_r, width_p), lambda i, h: (i, 0)),   # x row tile
            pl.BlockSpec((width_p, tile_h), lambda i, h: (0, h)),   # W1 hidden tile
            pl.BlockSpec((1, tile_h), lambda i, h: (0, h)),         # b1 hidden tile
            pl.BlockSpec((tile_h, width_p), lambda i, h: (h, 0)),   # W2 hidden tile
            pl.BlockSpec((1, width_p), lambda i, h: (0, 0)),        # b2
        ]
        out_specs = pl.BlockSpec((tile_r, width_p), lambda i, h: (i, 0))
        scratch_shapes = (pltpu.VMEM((tile_r, width_p), jnp.float32),)
        kernel = functools.partial(_ffn_streamed_kernel, mm_dtype=mm_dtype)
        dim_sem = ("parallel", "arbitrary")
        # Weights (and b1) are re-streamed once per row tile.
        bytes_accessed = (x_isz * padded_rows * width_p
                          + out_isz * padded_rows * width_p
                          + grid[0] * (w_isz * 2 * width_p * hidden_pp + 4 * hidden_pp)
                          + 4 * width_p)

    out = pl.pallas_call(
        kernel,
        out_shape=jax.ShapeDtypeStruct((padded_rows, width_p), out_dtype),
        grid_spec=pltpu.PrefetchScalarGridSpec(
            num_scalar_prefetch=0,
            grid=grid,
            in_specs=in_specs,
            out_specs=out_specs,
            scratch_shapes=scratch_shapes,
        ),
        compiler_params=pltpu.CompilerParams(
            dimension_semantics=dim_sem,
            vmem_limit_bytes=vmem_limit,
        ),
        cost_estimate=pl.CostEstimate(
            flops=int(flops),
            transcendentals=int(transcendentals),
            bytes_accessed=int(bytes_accessed),
        ),
    )(x2d, w1p, b1p, w2p, b2p)

    out = out[:rows, :width]
    return out.reshape(orig_shape)


# --------------------------------------------------------------------------- references


def _reference(x, w1, b1, w2, b2):
    """Pure-f32 JAX reference (eval-mode FeedForward, exact erf GELU)."""
    h = x @ w1 + b1
    h = 0.5 * h * (1.0 + jax.lax.erf(h * _INV_SQRT2))
    return h @ w2 + b2


def _reference_mixed(x, w1, b1, w2, b2):
    """Same math with bf16 matmul operands / f32 accumulation (what the kernel does)."""
    bf = jnp.bfloat16
    h = jnp.dot(x.astype(bf), w1.astype(bf), preferred_element_type=jnp.float32) + b1
    h = 0.5 * h * (1.0 + jax.lax.erf(h * _INV_SQRT2))
    return jnp.dot(h.astype(bf), w2.astype(bf), preferred_element_type=jnp.float32) + b2


if __name__ == "__main__":
    # Small shapes consistent with the module: tokens of dimension `width`.
    batch, seq, width = 2, 8, 32
    hidden = width * 4  # 128

    key = jax.random.PRNGKey(0)
    kx, kw1, kb1, kw2, kb2 = jax.random.split(key, 5)

    x = jax.random.normal(kx, (batch, seq, width), dtype=jnp.float32)

    # Deterministic parameter init (uniform, PyTorch-Linear-style bounds).
    bound1 = 1.0 / math.sqrt(width)
    w1 = jax.random.uniform(kw1, (width, hidden), jnp.float32, -bound1, bound1)
    b1 = jax.random.uniform(kb1, (hidden,), jnp.float32, -bound1, bound1)
    bound2 = 1.0 / math.sqrt(hidden)
    w2 = jax.random.uniform(kw2, (hidden, width), jnp.float32, -bound2, bound2)
    b2 = jax.random.uniform(kb2, (width,), jnp.float32, -bound2, bound2)

    out = feed_forward(x, w1, b1, w2, b2)
    out = jax.block_until_ready(out)

    assert out.shape == x.shape
    assert out.dtype == x.dtype

    # The kernel uses bf16 matmul operands with f32 accumulation (MXU-native), so the
    # pure-f32 reference is matched with mixed-precision-aware tolerance, and the
    # mixed-precision reference (same operand dtypes) is matched tightly.
    ref_f32 = _reference(x, w1, b1, w2, b2)
    assert jnp.allclose(out, ref_f32, atol=5e-2, rtol=5e-2), "mismatch vs f32 reference"

    ref_mp = _reference_mixed(x, w1, b1, w2, b2)
    assert jnp.allclose(out, ref_mp, atol=2e-3, rtol=2e-3), "mismatch vs mixed-precision reference"

    print("KERNEL_OK")
</pallas_src>

<mosaic_0001>
module attributes {stable_mosaic.version = 11 : i64} {
  func.func @_ffn_resident_kernel(%arg0: i32, %arg1: memref<16x128xf32, #tpu.memory_space<vmem>>, %arg2: memref<128x128xbf16, #tpu.memory_space<vmem>>, %arg3: memref<1x128xf32, #tpu.memory_space<vmem>>, %arg4: memref<128x128xbf16, #tpu.memory_space<vmem>>, %arg5: memref<1x128xf32, #tpu.memory_space<vmem>>, %arg6: memref<16x128xf32, #tpu.memory_space<vmem>>) attributes {dimension_semantics = [#tpu.dimension_semantics<parallel>], iteration_bounds = array<i64: 1>, scalar_prefetch = 0 : i64, scratch_operands = 0 : i64, tpu.core_type = #tpu.core_type<tc>, window_params = [{transform_indices = @transform_0, window_bounds = array<i64: 16, 128>}, {pipeline_mode = #tpu.pipeline_mode<synchronous>, transform_indices = @transform_1, window_bounds = array<i64: 128, 128>}, {pipeline_mode = #tpu.pipeline_mode<synchronous>, transform_indices = @transform_2, window_bounds = array<i64: 1, 128>}, {pipeline_mode = #tpu.pipeline_mode<synchronous>, transform_indices = @transform_3, window_bounds = array<i64: 128, 128>}, {pipeline_mode = #tpu.pipeline_mode<synchronous>, transform_indices = @transform_4, window_bounds = array<i64: 1, 128>}, {transform_indices = @transform_5, window_bounds = array<i64: 16, 128>}]} {
    %c0 = arith.constant 0 : index
    %c0_0 = arith.constant 0 : index
    %0 = vector.load %arg1[%c0, %c0_0] : memref<16x128xf32, #tpu.memory_space<vmem>>, vector<16x128xf32>
    %1 = arith.truncf %0 : vector<16x128xf32> to vector<16x128xbf16>
    %c0_1 = arith.constant 0 : index
    %c0_2 = arith.constant 0 : index
    %2 = vector.load %arg2[%c0_1, %c0_2] : memref<128x128xbf16, #tpu.memory_space<vmem>>, vector<128x128xbf16>
    %cst = arith.constant dense<0.000000e+00> : vector<16x128xf32>
    %3 = tpu.matmul %1, %2, %cst {dimension_numbers = #tpu.dot_dimension_numbers<[1], [0], [0], [1], [0, 0, 1, 1], [], []>} : vector<16x128xbf16>, vector<128x128xbf16>, vector<16x128xf32> -> vector<16x128xf32>
    %c0_3 = arith.constant 0 : index
    %c0_4 = arith.constant 0 : index
    %4 = vector.load %arg3[%c0_3, %c0_4] : memref<1x128xf32, #tpu.memory_space<vmem>>, vector<1x128xf32>
    %5 = vector.broadcast %4 : vector<1x128xf32> to vector<16x128xf32>
    %6 = arith.addf %3, %5 : vector<16x128xf32>
    %cst_5 = arith.constant 5.000000e-01 : f32
    %7 = vector.broadcast %cst_5 : f32 to vector<16x128xf32>
    %8 = arith.mulf %7, %6 : vector<16x128xf32>
    %cst_6 = arith.constant 0.707106769 : f32
    %9 = vector.broadcast %cst_6 : f32 to vector<16x128xf32>
    %10 = arith.mulf %6, %9 : vector<16x128xf32>
    %11 = math.erf %10 : vector<16x128xf32>
    %cst_7 = arith.constant 1.000000e+00 : f32
    %12 = vector.broadcast %cst_7 : f32 to vector<16x128xf32>
    %13 = arith.addf %12, %11 : vector<16x128xf32>
    %14 = arith.mulf %8, %13 : vector<16x128xf32>
    %15 = arith.truncf %14 : vector<16x128xf32> to vector<16x128xbf16>
    %c0_8 = arith.constant 0 : index
    %c0_9 = arith.constant 0 : index
    %16 = vector.load %arg4[%c0_8, %c0_9] : memref<128x128xbf16, #tpu.memory_space<vmem>>, vector<128x128xbf16>
    %cst_10 = arith.constant dense<0.000000e+00> : vector<16x128xf32>
    %17 = tpu.matmul %15, %16, %cst_10 {dimension_numbers = #tpu.dot_dimension_numbers<[1], [0], [0], [1], [0, 0, 1, 1], [], []>} : vector<16x128xbf16>, vector<128x128xbf16>, vector<16x128xf32> -> vector<16x128xf32>
    %c0_11 = arith.constant 0 : index
    %c0_12 = arith.constant 0 : index
    %18 = vector.load %arg5[%c0_11, %c0_12] : memref<1x128xf32, #tpu.memory_space<vmem>>, vector<1x128xf32>
    %19 = vector.broadcast %18 : vector<1x128xf32> to vector<16x128xf32>
    %20 = arith.addf %17, %19 : vector<16x128xf32>
    %c0_13 = arith.constant 0 : index
    %c0_14 = arith.constant 0 : index
    %21 = vector.load %arg6[%c0_13, %c0_14] : memref<16x128xf32, #tpu.memory_space<vmem>>, vector<16x128xf32>
    tpu.vector_store %arg6[%c0_13, %c0_14], %20 {strides = array<i32>} : memref<16x128xf32, #tpu.memory_space<vmem>>, vector<16x128xf32>,
    return
  }
  func.func @transform_0(%arg0: i32) -> (i32, i32) {
    %c0_i32 = arith.constant 0 : i32
    %c0_i32_0 = arith.constant 0 : i32
    return %arg0, %c0_i32 : i32, i32
  }
  func.func @transform_1(%arg0: i32) -> (i32, i32) {
    %c0_i32 = arith.constant 0 : i32
    %c0_i32_0 = arith.constant 0 : i32
    %c0_i32_1 = arith.constant 0 : i32
    return %c0_i32, %c0_i32_0 : i32, i32
  }
  func.func @transform_2(%arg0: i32) -> (i32, i32) {
    %c0_i32 = arith.constant 0 : i32
    %c0_i32_0 = arith.constant 0 : i32
    %c0_i32_1 = arith.constant 0 : i32
    return %c0_i32, %c0_i32_0 : i32, i32
  }
  func.func @transform_3(%arg0: i32) -> (i32, i32) {
    %c0_i32 = arith.constant 0 : i32
    %c0_i32_0 = arith.constant 0 : i32
    %c0_i32_1 = arith.constant 0 : i32
    return %c0_i32, %c0_i32_0 : i32, i32
  }
  func.func @transform_4(%arg0: i32) -> (i32, i32) {
    %c0_i32 = arith.constant 0 : i32
    %c0_i32_0 = arith.constant 0 : i32
    %c0_i32_1 = arith.constant 0 : i32
    return %c0_i32, %c0_i32_0 : i32, i32
  }
  func.func @transform_5(%arg0: i32) -> (i32, i32) {
    %c0_i32 = arith.constant 0 : i32
    %c0_i32_0 = arith.constant 0 : i32
    return %arg0, %c0_i32 : i32, i32
  }
}

</mosaic_0001>

<llo_original>
// kernel: feed_forward.1
$region0: #{feed_forward.1}
  #allocation0 [shape = 'u32[]', space=smem, size = 0x4, offset = 0x4, fixed_abs, tag = 'smem constant byte address 0x4 - core index']
  #allocation1 [shape = 'u32[144,128]{1,0:T(1,128)}', space=vmem, size = 0x12000, scoped, tag = 'internal scratch']
  %s0 = inlined_call_operand.vmem [shape: f32[16,128], index: 0, kind: input, shape index: {}]
  %s1 = inlined_call_operand.vmem [shape: bf16[128,128], index: 1, kind: input, shape index: {}]
  %s2 = inlined_call_operand.vmem [shape: f32[1,128], index: 2, kind: input, shape index: {}]
  %s3 = inlined_call_operand.vmem [shape: bf16[128,128], index: 3, kind: input, shape index: {}]
  %s4 = inlined_call_operand.vmem [shape: f32[1,128], index: 4, kind: input, shape index: {}]
  %s5 = inlined_call_operand.vmem [shape: f32[16,128], index: 5, kind: output, shape index: {}]
  %s6 = sld [smem:[#allocation0]]
  $region30: #{feed_forward.1} parent=0
    _
  %s8 = ssub.s32 1, %s6
  %s9 = scalar_select 0, %s8, %s6
  // Predicated region
  $region2: #{feed_forward.1} parent=0 // pred_check
    _
  $region3: #{feed_forward.1} parent=0 // pred_check_branch
    %11 = sbr.rel (0) target = $region5
  $region4: #{feed_forward.1} parent=0 // pred_region
    _
  $region5: #{feed_forward.1} parent=0 // pred_fallthru
    _
  // Predicated region
  $region6: #{feed_forward.1} parent=0 // pred_check
    _
  $region7: #{feed_forward.1} parent=0 // pred_check_branch
    %13 = sbr.rel (0) target = $region9
  $region8: #{feed_forward.1} parent=0 // pred_region
    _
  $region9: #{feed_forward.1} parent=0 // pred_fallthru
    _
  // Predicated region
  $region10: #{feed_forward.1} parent=0 // pred_check
    _
  $region11: #{feed_forward.1} parent=0 // pred_check_branch
    %15 = sbr.rel (0) target = $region13
  $region12: #{feed_forward.1} parent=0 // pred_region
    _
  $region13: #{feed_forward.1} parent=0 // pred_fallthru
    _
  // Predicated region
  $region14: #{feed_forward.1} parent=0 // pred_check
    _
  $region15: #{feed_forward.1} parent=0 // pred_check_branch
    %17 = sbr.rel (0) target = $region17
  $region16: #{feed_forward.1} parent=0 // pred_region
    _
  $region17: #{feed_forward.1} parent=0 // pred_fallthru
    _
  // Predicated region
  $region18: #{feed_forward.1} parent=0 // pred_check
    _
  $region19: #{feed_forward.1} parent=0 // pred_check_branch
    %19 = sbr.rel (0) target = $region21
  $region20: #{feed_forward.1} parent=0 // pred_region
    _
  $region21: #{feed_forward.1} parent=0 // pred_fallthru
    _
  %v21 = vld [vmem:[%s0] sm:$0xff]
  %v22 = vld [vmem:[%s0 + $0x8] sm:$0xff]
  %v23 = vpack.c.bf16 %v22, %v21
  %v24 = vld [vmem:[%s1] sm:$0xf]
  %v25 = vld [vmem:[%s1 + $0x4] sm:$0xf]
  %v26 = vld [vmem:[%s1 + $0x8] sm:$0xf]
  %v27 = vld [vmem:[%s1 + $0xc] sm:$0xf]
  %v28 = vld [vmem:[%s1 + $0x10] sm:$0xf]
  %v29 = vld [vmem:[%s1 + $0x14] sm:$0xf]
  %v30 = vld [vmem:[%s1 + $0x18] sm:$0xf]
  %v31 = vld [vmem:[%s1 + $0x1c] sm:$0xf]
  %v32 = vld [vmem:[%s1 + $0x20] sm:$0xf]
  %v33 = vld [vmem:[%s1 + $0x24] sm:$0xf]
  %v34 = vld [vmem:[%s1 + $0x28] sm:$0xf]
  %v35 = vld [vmem:[%s1 + $0x2c] sm:$0xf]
  %v36 = vld [vmem:[%s1 + $0x30] sm:$0xf]
  %v37 = vld [vmem:[%s1 + $0x34] sm:$0xf]
  %v38 = vld [vmem:[%s1 + $0x38] sm:$0xf]
  %v39 = vld [vmem:[%s1 + $0x3c] sm:$0xf]
  %v40 = vld [vmem:[%s2] sm:$0x1]
  %v42 = vlaneseq
  %v43 = vshrl.u32 %v42, 7
  %v44 = vsub.s32 0, %v43
  %v45 = vrot.slane %v40, %v44
  %v63 = vunpack.c.l.b16 %v24
  %v64 = vunpack.c.l.b16 %v25
  %v65 = vunpack.c.l.b16 %v26
  %v66 = vunpack.c.l.b16 %v27
  %v67 = vunpack.c.l.b16 %v28
  %v68 = vunpack.c.l.b16 %v29
  %v69 = vunpack.c.l.b16 %v30
  %v70 = vunpack.c.l.b16 %v31
  %v71 = vunpack.c.l.b16 %v32
  %v72 = vunpack.c.l.b16 %v33
  %v73 = vunpack.c.l.b16 %v34
  %v74 = vunpack.c.l.b16 %v35
  %v75 = vunpack.c.l.b16 %v36
  %v76 = vunpack.c.l.b16 %v37
  %v77 = vunpack.c.l.b16 %v38
  %v78 = vunpack.c.l.b16 %v39
  %v79 = vpack.c.b16 %v64, %v63
  %v80 = vpack.c.b16 %v66, %v65
  %v81 = vpack.c.b16 %v68, %v67
  %v82 = vpack.c.b16 %v70, %v69
  %v83 = vpack.c.b16 %v72, %v71
  %v84 = vpack.c.b16 %v74, %v73
  %v85 = vpack.c.b16 %v76, %v75
  %v86 = vpack.c.b16 %v78, %v77
  %95 = vmatprep.subr.bf16.mxu0 0
  %96 = vmatpush1.bf16.msra.mxu0 %v86
  %97 = vmatprep.subr.bf16.mxu0 0
  %98 = vmatpush1.bf16.msra.mxu0 %v85
  %99 = vmatprep.subr.bf16.mxu0 0
  %100 = vmatpush1.bf16.msra.mxu0 %v84
  %101 = vmatprep.subr.bf16.mxu0 0
  %102 = vmatpush1.bf16.msra.mxu0 %v83
  %103 = vmatprep.subr.bf16.mxu0 0
  %104 = vmatpush1.bf16.msra.mxu0 %v82
  %105 = vmatprep.subr.bf16.mxu0 0
  %106 = vmatpush1.bf16.msra.mxu0 %v81
  %107 = vmatprep.subr.bf16.mxu0 0
  %108 = vmatpush1.bf16.msra.mxu0 %v80
  %109 = vmatprep.subr.bf16.mxu0 0
  %110 = vmatpush1.bf16.msra.mxu0 %v79
  %111 = vmatprep.subr.bf16.mxu0 0
  %112 = vmatpush2.bf16.msra.mxu0 0
  %113 = vmatprep.subr.bf16.mxu0 0
  %114 = vmatpush2.bf16.msra.mxu0 0
  %115 = vmatprep.subr.bf16.mxu0 0
  %116 = vmatpush2.bf16.msra.mxu0 0
  %117 = vmatprep.subr.bf16.mxu0 0
  %118 = vmatpush2.bf16.msra.mxu0 0
  %119 = vmatprep.subr.bf16.mxu0 0
  %120 = vmatpush2.bf16.msra.mxu0 0
  %121 = vmatprep.subr.bf16.mxu0 0
  %122 = vmatpush2.bf16.msra.mxu0 0
  %123 = vmatprep.subr.bf16.mxu0 0
  %124 = vmatpush2.bf16.msra.mxu0 0
  %125 = vmatprep.subr.bf16.mxu0 0
  %126 = vmatpush2.bf16.msra.mxu0 0
  %127 = vmatprep.mubr.bf16.mxu0 0
  %128 = vmatmul.mubr.bf16.gmra.mxu0 %v23
  %v129 = vpop.f32.mrf.mxu0
  %v130 = vadd.f32 %v45, %v129
  %v131 = vpop.f32.mrf.mxu0
  %v132 = vpop.f32.mrf.mxu0
  %v133 = vadd.f32 %v45, %v132
  %v134 = vpop.f32.mrf.mxu0
  %135 = vdwg.mxu0
  %v136 = vmul.f32 %v130, 0.5
  %v137 = vmul.f32 %v133, 0.5
  %v138 = vmul.f32 %v130, 0.70710677
  %v139 = vmul.f32 %v133, 0.70710677
  %v140 = verf.f32.pop %v138
  %v141 = verf.f32.pop %v139
  %v142 = vadd.f32 %v140, 1.0
  %v143 = vadd.f32 %v141, 1.0
  %v144 = vmul.f32 %v136, %v142
  %v145 = vmul.f32 %v137, %v143
  %v146 = vpack.c.bf16 %v145, %v144
  %v147 = vld [vmem:[%s3] sm:$0xf]
  %v148 = vld [vmem:[%s3 + $0x4] sm:$0xf]
  %v149 = vld [vmem:[%s3 + $0x8] sm:$0xf]
  %v150 = vld [vmem:[%s3 + $0xc] sm:$0xf]
  %v151 = vld [vmem:[%s3 + $0x10] sm:$0xf]
  %v152 = vld [vmem:[%s3 + $0x14] sm:$0xf]
  %v153 = vld [vmem:[%s3 + $0x18] sm:$0xf]
  %v154 = vld [vmem:[%s3 + $0x1c] sm:$0xf]
  %v155 = vld [vmem:[%s3 + $0x20] sm:$0xf]
  %v156 = vld [vmem:[%s3 + $0x24] sm:$0xf]
  %v157 = vld [vmem:[%s3 + $0x28] sm:$0xf]
  %v158 = vld [vmem:[%s3 + $0x2c] sm:$0xf]
  %v159 = vld [vmem:[%s3 + $0x30] sm:$0xf]
  %v160 = vld [vmem:[%s3 + $0x34] sm:$0xf]
  %v161 = vld [vmem:[%s3 + $0x38] sm:$0xf]
  %v162 = vld [vmem:[%s3 + $0x3c] sm:$0xf]
  %v163 = vld [vmem:[%s4] sm:$0x1]
  %v165 = vlaneseq
  %v166 = vshrl.u32 %v165, 7
  %v167 = vsub.s32 0, %v166
  %v168 = vrot.slane %v163, %v167
  %v186 = vunpack.c.l.b16 %v147
  %v187 = vunpack.c.l.b16 %v148
  %v188 = vunpack.c.l.b16 %v149
  %v189 = vunpack.c.l.b16 %v150
  %v190 = vunpack.c.l.b16 %v151
  %v191 = vunpack.c.l.b16 %v152
  %v192 = vunpack.c.l.b16 %v153
  %v193 = vunpack.c.l.b16 %v154
  %v194 = vunpack.c.l.b16 %v155
  %v195 = vunpack.c.l.b16 %v156
  %v196 = vunpack.c.l.b16 %v157
  %v197 = vunpack.c.l.b16 %v158
  %v198 = vunpack.c.l.b16 %v159
  %v199 = vunpack.c.l.b16 %v160
  %v200 = vunpack.c.l.b16 %v161
  %v201 = vunpack.c.l.b16 %v162
  %v202 = vpack.c.b16 %v187, %v186
  %v203 = vpack.c.b16 %v189, %v188
  %v204 = vpack.c.b16 %v191, %v190
  %v205 = vpack.c.b16 %v193, %v192
  %v206 = vpack.c.b16 %v195, %v194
  %v207 = vpack.c.b16 %v197, %v196
  %v208 = vpack.c.b16 %v199, %v198
  %v209 = vpack.c.b16 %v201, %v200
  %218 = vmatprep.subr.bf16.mxu0 0
  %219 = vmatpush1.bf16.msra.mxu0 %v209
  %220 = vmatprep.subr.bf16.mxu0 0
  %221 = vmatpush1.bf16.msra.mxu0 %v208
  %222 = vmatprep.subr.bf16.mxu0 0
  %223 = vmatpush1.bf16.msra.mxu0 %v207
  %224 = vmatprep.subr.bf16.mxu0 0
  %225 = vmatpush1.bf16.msra.mxu0 %v206
  %226 = vmatprep.subr.bf16.mxu0 0
  %227 = vmatpush1.bf16.msra.mxu0 %v205
  %228 = vmatprep.subr.bf16.mxu0 0
  %229 = vmatpush1.bf16.msra.mxu0 %v204
  %230 = vmatprep.subr.bf16.mxu0 0
  %231 = vmatpush1.bf16.msra.mxu0 %v203
  %232 = vmatprep.subr.bf16.mxu0 0
  %233 = vmatpush1.bf16.msra.mxu0 %v202
  %234 = vmatprep.subr.bf16.mxu0 0
  %235 = vmatpush2.bf16.msra.mxu0 0
  %236 = vmatprep.subr.bf16.mxu0 0
  %237 = vmatpush2.bf16.msra.mxu0 0
  %238 = vmatprep.subr.bf16.mxu0 0
  %239 = vmatpush2.bf16.msra.mxu0 0
  %240 = vmatprep.subr.bf16.mxu0 0
  %241 = vmatpush2.bf16.msra.mxu0 0
  %242 = vmatprep.subr.bf16.mxu0 0
  %243 = vmatpush2.bf16.msra.mxu0 0
  %244 = vmatprep.subr.bf16.mxu0 0
  %245 = vmatpush2.bf16.msra.mxu0 0
  %246 = vmatprep.subr.bf16.mxu0 0
  %247 = vmatpush2.bf16.msra.mxu0 0
  %248 = vmatprep.subr.bf16.mxu0 0
  %249 = vmatpush2.bf16.msra.mxu0 0
  %250 = vmatprep.mubr.bf16.mxu0 0
  %251 = vmatmul.mubr.bf16.gmra.mxu0 %v146
  %v252 = vpop.f32.mrf.mxu0
  %v253 = vadd.f32 %v168, %v252
  %v254 = vpop.f32.mrf.mxu0
  %v255 = vpop.f32.mrf.mxu0
  %v256 = vadd.f32 %v168, %v255
  %v257 = vpop.f32.mrf.mxu0
  %258 = vdwg.mxu0
  %259 = vst [vmem:[%s5] sm:$0xff] %v253
  %260 = vst [vmem:[%s5 + $0x8] sm:$0xff] %v256
  // Predicated region
  $region22: #{feed_forward.1} parent=0 // pred_check
    _
  $region23: #{feed_forward.1} parent=0 // pred_check_branch
    %262 = sbr.rel (0) target = $region25
  $region24: #{feed_forward.1} parent=0 // pred_region
    _
  $region25: #{feed_forward.1} parent=0 // pred_fallthru
    _
  // Predicated region
  $region26: #{feed_forward.1} parent=0 // pred_check
    _
  $region27: #{feed_forward.1} parent=0 // pred_check_branch
    %264 = sbr.rel (0) target = $region29
  $region28: #{feed_forward.1} parent=0 // pred_region
    _
  $region29: #{feed_forward.1} parent=0 // pred_fallthru
    _

</llo_original>
